<compile_context>
chip_gen: v7x
topology: tpu7x:2x2x1
jax: 0.10.0
libtpu: 0.0.40
codegen_flags: <defaults>
</compile_context>

<pallas_src>
import functools

import jax
import jax.numpy as jnp
from jax.experimental import pallas as pl
from jax.experimental.pallas import tpu as pltpu

# ---------------------------------------------------------------------------
# Activation table (matches the torch nn.* modules used in NeuralNetwork)
# ---------------------------------------------------------------------------
_ACTS = {
    "ReLU": lambda v: jnp.maximum(v, 0.0),
    "sigmoid": jax.nn.sigmoid,
    "tanh": jnp.tanh,
    "leakyReLU": lambda v: jnp.where(v >= 0.0, v, 0.01 * v),  # torch default slope
    "identity": lambda v: v,
}

_LANE = 128        # TPU lane width; every hidden width is zero-padded to this
_SUBLANE = 8       # f32 sublane multiple for the batch axis
_GRIDLESS_MAX = 256  # below this batch size, run one gridless VMEM-resident block


def _round_up(n, m):
    return ((n + m - 1) // m) * m


# ---------------------------------------------------------------------------
# Pallas kernel: fused MLP (all Linear layers + activations in one kernel)
# ---------------------------------------------------------------------------
def _mlp_kernel(x_ref, *refs, activations, d_in, d_out):
    """refs = (W1, b1, W2, b2, ..., out_ref, xpad_scratch).

    PADDING INVARIANT: every padded weight Wp has zero ROWS beyond its true
    fan-in, so whatever an activation writes into padded lanes of h
    (e.g. sigmoid(0)=0.5) is annihilated by the next layer's zero rows.
    h stays 128-lane between layers; only the final store slices to d_out.
    """
    *param_refs, out_ref, xpad_ref = refs
    n_layers = len(param_refs) // 2

    # Widen the narrow (TB, d_in) input block to 128 lanes inside VMEM.
    xpad_ref[...] = jnp.zeros_like(xpad_ref)
    xpad_ref[:, :d_in] = x_ref[...]
    h = xpad_ref[...]

    for i in range(n_layers):
        w = param_refs[2 * i][...]
        b = param_refs[2 * i + 1][...]          # (1, 128) -> broadcasts over rows
        h = jnp.dot(h, w, preferred_element_type=jnp.float32) + b
        if i < len(activations):
            h = _ACTS[activations[i]](h)        # activations in f32 (EUP)
    # Only the true output lanes touch HBM (masked store, d_out lanes).
    out_ref[...] = h[:, :d_out].astype(out_ref.dtype)


# ---------------------------------------------------------------------------
# Builder: pads parameters ONCE and returns a jitted forward(x, t) -> [B, d_out]
# ---------------------------------------------------------------------------
def build_forward(weights, biases, activations, *, batch_tile=2048):
    d_in = weights[0].shape[0]
    d_out = weights[-1].shape[1]
    n_layers = len(weights)
    for W in weights:
        assert W.shape[0] <= _LANE and W.shape[1] <= _LANE, (
            "single-block kernel assumes every layer width <= 128")
        # TODO(synk): add a K/N contraction grid for hidden widths > 128.

    # ---- one-time parameter padding (hoisted out of the forward pass) ----
    params = []
    for W, b in zip(weights, biases):
        din, dout = W.shape
        Wp = jnp.zeros((_LANE, _LANE), jnp.float32).at[:din, :dout].set(W)
        bp = jnp.zeros((1, _LANE), jnp.float32).at[0, :dout].set(b)
        params += [Wp, bp]
    params = tuple(params)

    kernel = functools.partial(_mlp_kernel, activations=tuple(activations),
                               d_in=d_in, d_out=d_out)

    @jax.jit
    def forward(x, t):
        X = jnp.concatenate([x, t], axis=1).astype(jnp.float32)  # torch.cat(..., axis=1)
        B = X.shape[0]

        if B <= _GRIDLESS_MAX:
            # ------- small batch: gridless, whole problem resident in VMEM -------
            B_pad = max(_SUBLANE, _round_up(B, _SUBLANE))
            Xp = X if B_pad == B else jnp.zeros((B_pad, d_in), jnp.float32).at[:B].set(X)
            out = pl.pallas_call(
                kernel,
                out_shape=jax.ShapeDtypeStruct((B_pad, d_out), jnp.float32),
                scratch_shapes=[pltpu.VMEM((B_pad, _LANE), jnp.float32)],
            )(Xp, *params)
        else:
            # ------- large batch: tile the batch axis, params VMEM-resident -------
            # Cap the tile at ~B/2 so the grid always has >= 2 steps (so both of
            # v7x's TensorCores get work); otherwise use the large default tile so
            # per-step overhead (~0.35us) stays amortized.
            TB = min(batch_tile, _round_up((B + 1) // 2, _SUBLANE))
            TB = max(TB, _SUBLANE)
            B_pad = _round_up(B, TB)
            Xp = X if B_pad == B else jnp.zeros((B_pad, d_in), jnp.float32).at[:B].set(X)

            in_specs = [pl.BlockSpec((TB, d_in), lambda i: (i, 0))]
            for _ in range(n_layers):
                # Constant block index => Pallas keeps these blocks VMEM-resident
                # and skips the DMA on subsequent grid steps.
                in_specs.append(pl.BlockSpec((_LANE, _LANE), lambda i: (0, 0)))
                in_specs.append(pl.BlockSpec((1, _LANE), lambda i: (0, 0)))

            out = pl.pallas_call(
                kernel,
                out_shape=jax.ShapeDtypeStruct((B_pad, d_out), jnp.float32),
                grid=(B_pad // TB,),
                in_specs=in_specs,
                out_specs=pl.BlockSpec((TB, d_out), lambda i: (i, 0)),
                scratch_shapes=[pltpu.VMEM((TB, _LANE), jnp.float32)],
                compiler_params=pltpu.CompilerParams(
                    dimension_semantics=("parallel",)),   # 2 TCs on v7x
            )(Xp, *params)

        return out[:B, :]   # batch-only slice; lane width already == d_out

    return forward


# ---------------------------------------------------------------------------
# Deterministic parameter construction (mirrors nn.Linear + xavier/he init)
# ---------------------------------------------------------------------------
def make_params(layers, init, key):
    weights, biases = [], []
    for i in range(len(layers) - 1):
        fan_in, fan_out = layers[i], layers[i + 1]
        key, kw, kb = jax.random.split(key, 3)
        if init == "xavier" or init is None:
            std = (2.0 / (fan_in + fan_out)) ** 0.5           # xavier_normal_
        elif init == "he":
            std = (2.0 / fan_in) ** 0.5                       # kaiming_normal_ (fan_in)
        else:
            raise ValueError(f"{init} is not a valid initialization")
        W = std * jax.random.normal(kw, (fan_in, fan_out), jnp.float32)  # [in, out]
        bound = 1.0 / (fan_in ** 0.5)                          # nn.Linear default bias
        b = jax.random.uniform(kb, (fan_out,), jnp.float32, -bound, bound)
        weights.append(W)
        biases.append(b)
    return weights, biases


# ---------------------------------------------------------------------------
# Pure-JAX reference for sanity
# ---------------------------------------------------------------------------
def reference_forward(x, t, weights, biases, activations):
    h = jnp.concatenate([x, t], axis=1).astype(jnp.float32)
    for i, (W, b) in enumerate(zip(weights, biases)):
        h = h @ W + b
        if i < len(activations):
            h = _ACTS[activations[i]](h)
    return h


if __name__ == "__main__":
    # Small PINN-style config: input = concat(x, t) -> 2 features, hidden 32, output 1
    layers = [2, 32, 32, 1]
    activations = ["tanh", "tanh", "identity"]
    init = "xavier"

    key = jax.random.PRNGKey(0)
    key, kx, kt, kp = jax.random.split(key, 4)
    weights, biases = make_params(layers, init, kp)

    forward = build_forward(weights, biases, activations)

    # --- small batch: exercises the gridless single-block path ---
    batch = 8
    x = jax.random.normal(kx, (batch, 1), jnp.float32)   # position
    t = jax.random.normal(kt, (batch, 1), jnp.float32)   # time
    out = jax.block_until_ready(forward(x, t))
    ref = reference_forward(x, t, weights, biases, activations)
    assert out.shape == (batch, layers[-1]), out.shape
    assert jnp.allclose(out, ref, atol=1e-5, rtol=1e-5)

    # --- larger batch: exercises the batch-tiled grid path (>=2 tiles) ---
    big = 1024
    key, kx2, kt2 = jax.random.split(key, 3)
    xb = jax.random.normal(kx2, (big, 1), jnp.float32)
    tb = jax.random.normal(kt2, (big, 1), jnp.float32)
    out_b = jax.block_until_ready(forward(xb, tb))
    ref_b = reference_forward(xb, tb, weights, biases, activations)
    assert out_b.shape == (big, layers[-1]), out_b.shape
    assert jnp.allclose(out_b, ref_b, atol=1e-4, rtol=1e-4)

    print("KERNEL_OK")
</pallas_src>

<mosaic_0001>
module attributes {stable_mosaic.version = 11 : i64} {
  func.func @_mlp_kernel(%arg0: memref<8x2xf32, #tpu.memory_space<vmem>>, %arg1: memref<128x128xf32, #tpu.memory_space<vmem>>, %arg2: memref<1x128xf32, #tpu.memory_space<vmem>>, %arg3: memref<128x128xf32, #tpu.memory_space<vmem>>, %arg4: memref<1x128xf32, #tpu.memory_space<vmem>>, %arg5: memref<128x128xf32, #tpu.memory_space<vmem>>, %arg6: memref<1x128xf32, #tpu.memory_space<vmem>>, %arg7: memref<8x1xf32, #tpu.memory_space<vmem>>, %arg8: memref<8x128xf32, #tpu.memory_space<vmem>>) attributes {dimension_semantics = [], scalar_prefetch = 0 : i64, scratch_operands = 1 : i64, tpu.core_type = #tpu.core_type<tc>} {
    %cst = arith.constant 0.000000e+00 : f32
    %0 = vector.broadcast %cst : f32 to vector<8x128xf32>
    %c0 = arith.constant 0 : index
    %c0_0 = arith.constant 0 : index
    %1 = vector.load %arg8[%c0, %c0_0] : memref<8x128xf32, #tpu.memory_space<vmem>>, vector<8x128xf32>
    tpu.vector_store %arg8[%c0, %c0_0], %0 {strides = array<i32>} : memref<8x128xf32, #tpu.memory_space<vmem>>, vector<8x128xf32>,
    %c0_1 = arith.constant 0 : index
    %c0_2 = arith.constant 0 : index
    %2 = vector.load %arg0[%c0_1, %c0_2] : memref<8x2xf32, #tpu.memory_space<vmem>>, vector<8x2xf32>
    %c0_3 = arith.constant 0 : index
    %c0_4 = arith.constant 0 : index
    %3 = vector.load %arg8[%c0_3, %c0_4] : memref<8x128xf32, #tpu.memory_space<vmem>>, vector<8x2xf32>
    tpu.vector_store %arg8[%c0_3, %c0_4], %2 {strides = array<i32>} : memref<8x128xf32, #tpu.memory_space<vmem>>, vector<8x2xf32>,
    %c0_5 = arith.constant 0 : index
    %c0_6 = arith.constant 0 : index
    %4 = vector.load %arg8[%c0_5, %c0_6] : memref<8x128xf32, #tpu.memory_space<vmem>>, vector<8x128xf32>
    %c0_7 = arith.constant 0 : index
    %c0_8 = arith.constant 0 : index
    %5 = vector.load %arg1[%c0_7, %c0_8] : memref<128x128xf32, #tpu.memory_space<vmem>>, vector<128x128xf32>
    %c0_9 = arith.constant 0 : index
    %c0_10 = arith.constant 0 : index
    %6 = vector.load %arg2[%c0_9, %c0_10] : memref<1x128xf32, #tpu.memory_space<vmem>>, vector<1x128xf32>
    %cst_11 = arith.constant dense<0.000000e+00> : vector<8x128xf32>
    %7 = tpu.matmul %4, %5, %cst_11 {dimension_numbers = #tpu.dot_dimension_numbers<[1], [0], [0], [1], [0, 0, 1, 1], [], []>} : vector<8x128xf32>, vector<128x128xf32>, vector<8x128xf32> -> vector<8x128xf32>
    %8 = vector.broadcast %6 : vector<1x128xf32> to vector<8x128xf32>
    %9 = arith.addf %7, %8 : vector<8x128xf32>
    %10 = math.tanh %9 : vector<8x128xf32>
    %c0_12 = arith.constant 0 : index
    %c0_13 = arith.constant 0 : index
    %11 = vector.load %arg3[%c0_12, %c0_13] : memref<128x128xf32, #tpu.memory_space<vmem>>, vector<128x128xf32>
    %c0_14 = arith.constant 0 : index
    %c0_15 = arith.constant 0 : index
    %12 = vector.load %arg4[%c0_14, %c0_15] : memref<1x128xf32, #tpu.memory_space<vmem>>, vector<1x128xf32>
    %cst_16 = arith.constant dense<0.000000e+00> : vector<8x128xf32>
    %13 = tpu.matmul %10, %11, %cst_16 {dimension_numbers = #tpu.dot_dimension_numbers<[1], [0], [0], [1], [0, 0, 1, 1], [], []>} : vector<8x128xf32>, vector<128x128xf32>, vector<8x128xf32> -> vector<8x128xf32>
    %14 = vector.broadcast %12 : vector<1x128xf32> to vector<8x128xf32>
    %15 = arith.addf %13, %14 : vector<8x128xf32>
    %16 = math.tanh %15 : vector<8x128xf32>
    %c0_17 = arith.constant 0 : index
    %c0_18 = arith.constant 0 : index
    %17 = vector.load %arg5[%c0_17, %c0_18] : memref<128x128xf32, #tpu.memory_space<vmem>>, vector<128x128xf32>
    %c0_19 = arith.constant 0 : index
    %c0_20 = arith.constant 0 : index
    %18 = vector.load %arg6[%c0_19, %c0_20] : memref<1x128xf32, #tpu.memory_space<vmem>>, vector<1x128xf32>
    %cst_21 = arith.constant dense<0.000000e+00> : vector<8x128xf32>
    %19 = tpu.matmul %16, %17, %cst_21 {dimension_numbers = #tpu.dot_dimension_numbers<[1], [0], [0], [1], [0, 0, 1, 1], [], []>} : vector<8x128xf32>, vector<128x128xf32>, vector<8x128xf32> -> vector<8x128xf32>
    %20 = vector.broadcast %18 : vector<1x128xf32> to vector<8x128xf32>
    %21 = arith.addf %19, %20 : vector<8x128xf32>
    %22 = vector.extract_strided_slice %21 {offsets = [0, 0], sizes = [8, 1], strides = [1, 1]} : vector<8x128xf32> to vector<8x1xf32>
    %c0_22 = arith.constant 0 : index
    %c0_23 = arith.constant 0 : index
    %23 = vector.load %arg7[%c0_22, %c0_23] : memref<8x1xf32, #tpu.memory_space<vmem>>, vector<8x1xf32>
    tpu.vector_store %arg7[%c0_22, %c0_23], %22 {strides = array<i32>} : memref<8x1xf32, #tpu.memory_space<vmem>>, vector<8x1xf32>,
    return
  }
}

</mosaic_0001>

<llo_original>
// kernel: forward.1
$region0: #{forward.1}
  #allocation0 [shape = 'u32[]', space=smem, size = 0x4, offset = 0x4, fixed_abs, tag = 'smem constant byte address 0x4 - core index']
  #allocation1 [shape = 'u32[144,128]{1,0:T(1,128)}', space=vmem, size = 0x12000, scoped, tag = 'internal scratch']
  #allocation2 [shape = 'f32[8,128]{1,0:T(8,128)}', space=vmem, size = 0x1000, scoped, tag = 'scratch operand']
  %s0 = inlined_call_operand.vmem [shape: f32[8,2], index: 0, kind: input, shape index: {}]
  %s1 = inlined_call_operand.hbm [shape: f32[128,128], index: 1, kind: input, shape index: {}]
  %s2 = inlined_call_operand.vmem [shape: f32[1,128], index: 2, kind: input, shape index: {}]
  %s3 = inlined_call_operand.hbm [shape: f32[128,128], index: 3, kind: input, shape index: {}]
  %s4 = inlined_call_operand.vmem [shape: f32[1,128], index: 4, kind: input, shape index: {}]
  %s5 = inlined_call_operand.hbm [shape: f32[128,128], index: 5, kind: input, shape index: {}]
  %s6 = inlined_call_operand.vmem [shape: f32[1,128], index: 6, kind: input, shape index: {}]
  %s7 = inlined_call_operand.vmem [shape: f32[8,1], index: 7, kind: output, shape index: {}]
  %s8 = sld [smem:[#allocation0]]
  $region50: #{forward.1} parent=0
    _
  %s10 = ssub.s32 1, %s8
  %s11 = scalar_select 0, %s10, %s8
  $region1: #{forward.1} parent=0
    #allocation3 [shape = 'u8[65536]{0}', space=vmem, size = 0x10000, scoped, tag = 'input window, operand 1, single buffered']
    #allocation4 [shape = 's32[1]{0}', space=sflag, size = 0x4, scoped, tag = 'scoped memory for forward.1']
    #allocation5 [shape = 'u8[65536]{0}', space=vmem, size = 0x10000, scoped, tag = 'input window, operand 3, single buffered']
    #allocation6 [shape = 's32[1]{0}', space=sflag, size = 0x4, scoped, tag = 'scoped memory for forward.1']
    #allocation7 [shape = 'u8[65536]{0}', space=vmem, size = 0x10000, scoped, tag = 'input window, operand 5, single buffered']
    %12 = vsyncpa [#allocation4], 0
    %13 = vsyncpa [#allocation6], 0
    // Predicated region
    $region2: #{forward.1} parent=1 // pred_check
      _
    $region3: #{forward.1} parent=1 // pred_check_branch
      %15 = sbr.rel (0) target = $region5
    $region4: #{forward.1} parent=1 // pred_region
      _
    $region5: #{forward.1} parent=1 // pred_fallthru
      _
    // Predicated region
    $region6: #{forward.1} parent=1 // pred_check
      _
    $region7: #{forward.1} parent=1 // pred_check_branch
      %17 = sbr.rel (0) target = $region9
    $region8: #{forward.1} parent=1 // pred_region
      %s19 = ssub.s32 2048, 2048
      %20 = vsyncadd [#allocation4], %s19
      %s21 = sshll.u32 [#allocation3], 4
      %s22 = int_to_ptr.vmem [resolvable:$true] %s21
      %27 = dma.hbm_to_vmem [thread:$0]  %s1, 2048, %s22, [#allocation4], 128, 128, 8
    $region9: #{forward.1} parent=1 // pred_fallthru
      _
    // Predicated region
    $region10: #{forward.1} parent=1 // pred_check
      _
    $region11: #{forward.1} parent=1 // pred_check_branch
      %29 = sbr.rel (0) target = $region13
    $region12: #{forward.1} parent=1 // pred_region
      _
    $region13: #{forward.1} parent=1 // pred_fallthru
      _
    // Predicated region
    $region14: #{forward.1} parent=1 // pred_check
      _
    $region15: #{forward.1} parent=1 // pred_check_branch
      %31 = sbr.rel (0) target = $region17
    $region16: #{forward.1} parent=1 // pred_region
      %s33 = ssub.s32 2048, 2048
      %34 = vsyncadd [#allocation6], %s33
      %s35 = sshll.u32 [#allocation5], 4
      %s36 = int_to_ptr.vmem [resolvable:$true] %s35
      %41 = dma.hbm_to_vmem [thread:$0]  %s3, 2048, %s36, [#allocation6], 128, 128, 8
    $region17: #{forward.1} parent=1 // pred_fallthru
      _
    // Predicated region
    $region18: #{forward.1} parent=1 // pred_check
      _
    $region19: #{forward.1} parent=1 // pred_check_branch
      %43 = sbr.rel (0) target = $region21
    $region20: #{forward.1} parent=1 // pred_region
      _
    $region21: #{forward.1} parent=1 // pred_fallthru
      _
    // Predicated region
    $region22: #{forward.1} parent=1 // pred_check
      _
    $region23: #{forward.1} parent=1 // pred_check_branch
      %45 = sbr.rel (0) target = $region25
    $region24: #{forward.1} parent=1 // pred_region
      %s47 = ssub.s32 2048, 2048
      %48 = vsyncadd [#allocation6], %s47
      %s49 = sshll.u32 [#allocation7], 4
      %s50 = int_to_ptr.vmem [resolvable:$true] %s49
      %55 = dma.hbm_to_vmem [thread:$0]  %s5, 2048, %s50, [#allocation6], 128, 128, 8
    $region25: #{forward.1} parent=1 // pred_fallthru
      _
    // Predicated region
    $region26: #{forward.1} parent=1 // pred_check
      _
    $region27: #{forward.1} parent=1 // pred_check_branch
      %57 = sbr.rel (0) target = $region29
    $region28: #{forward.1} parent=1 // pred_region
      _
    $region29: #{forward.1} parent=1 // pred_fallthru
      _
    // Predicated region
    $region30: #{forward.1} parent=1 // pred_check
      _
    $region31: #{forward.1} parent=1 // pred_check_branch
      %59 = sbr.rel (0) target = $region33
    $region32: #{forward.1} parent=1 // pred_region
      %60 = dma.done [#allocation4], 2048
    $region33: #{forward.1} parent=1 // pred_fallthru
      _
    // Predicated region
    $region34: #{forward.1} parent=1 // pred_check
      _
    $region35: #{forward.1} parent=1 // pred_check_branch
      %62 = sbr.rel (0) target = $region37
    $region36: #{forward.1} parent=1 // pred_region
      %63 = dma.done [#allocation6], 2048
    $region37: #{forward.1} parent=1 // pred_fallthru
      _
    // Predicated region
    $region38: #{forward.1} parent=1 // pred_check
      _
    $region39: #{forward.1} parent=1 // pred_check_branch
      %65 = sbr.rel (0) target = $region41
    $region40: #{forward.1} parent=1 // pred_region
      %66 = dma.done [#allocation6], 2048
    $region41: #{forward.1} parent=1 // pred_fallthru
      _
    %67 = vst [vmem:[#allocation2] sm:$0xff] 0.0
    %v68 = vld [vmem:[%s0] sm:$0xff]
    %vm69 = vcmask 15360
    %70 = vst.msk [vmem:[#allocation2] sm:$0xff] %vm69, %v68
    %v71 = vld [vmem:[#allocation2] sm:$0xff]
    %v72 = vld [vmem:[#allocation3] sm:$0xff]
    %v73 = vld [vmem:[#allocation3 + $0x8] sm:$0xff]
    %v74 = vld [vmem:[#allocation3 + $0x10] sm:$0xff]
    %v75 = vld [vmem:[#allocation3 + $0x18] sm:$0xff]
    %v76 = vld [vmem:[#allocation3 + $0x20] sm:$0xff]
    %v77 = vld [vmem:[#allocation3 + $0x28] sm:$0xff]
    %v78 = vld [vmem:[#allocation3 + $0x30] sm:$0xff]
    %v79 = vld [vmem:[#allocation3 + $0x38] sm:$0xff]
    %v80 = vld [vmem:[#allocation3 + $0x40] sm:$0xff]
    %v81 = vld [vmem:[#allocation3 + $0x48] sm:$0xff]
    %v82 = vld [vmem:[#allocation3 + $0x50] sm:$0xff]
    %v83 = vld [vmem:[#allocation3 + $0x58] sm:$0xff]
    %v84 = vld [vmem:[#allocation3 + $0x60] sm:$0xff]
    %v85 = vld [vmem:[#allocation3 + $0x68] sm:$0xff]
    %v86 = vld [vmem:[#allocation3 + $0x70] sm:$0xff]
    %v87 = vld [vmem:[#allocation3 + $0x78] sm:$0xff]
    %v88 = vld [vmem:[%s2] sm:$0x1]
    %v90 = vlaneseq
    %v91 = vshrl.u32 %v90, 7
    %v92 = vsub.s32 0, %v91
    %v93 = vrot.slane %v88, %v92
    %95 = vmatprep.subr.mxu0 0.0
    %96 = vmatpush1.msra.mxu0 %v72
    %97 = vmatprep.subr.mxu0 0.0
    %98 = vmatpush1.msra.mxu0 %v73
    %99 = vmatprep.subr.mxu0 0.0
    %100 = vmatpush1.msra.mxu0 %v74
    %101 = vmatprep.subr.mxu0 0.0
    %102 = vmatpush1.msra.mxu0 %v75
    %103 = vmatprep.subr.mxu0 0.0
    %104 = vmatpush1.msra.mxu0 %v76
    %105 = vmatprep.subr.mxu0 0.0
    %106 = vmatpush1.msra.mxu0 %v77
    %107 = vmatprep.subr.mxu0 0.0
    %108 = vmatpush1.msra.mxu0 %v78
    %109 = vmatprep.subr.mxu0 0.0
    %110 = vmatpush1.msra.mxu0 %v79
    %111 = vmatprep.subr.mxu0 0.0
    %112 = vmatpush1.msra.mxu0 %v80
    %113 = vmatprep.subr.mxu0 0.0
    %114 = vmatpush1.msra.mxu0 %v81
    %115 = vmatprep.subr.mxu0 0.0
    %116 = vmatpush1.msra.mxu0 %v82
    %117 = vmatprep.subr.mxu0 0.0
    %118 = vmatpush1.msra.mxu0 %v83
    %119 = vmatprep.subr.mxu0 0.0
    %120 = vmatpush1.msra.mxu0 %v84
    %121 = vmatprep.subr.mxu0 0.0
    %122 = vmatpush1.msra.mxu0 %v85
    %123 = vmatprep.subr.mxu0 0.0
    %124 = vmatpush1.msra.mxu0 %v86
    %125 = vmatprep.subr.mxu0 0.0
    %126 = vmatpush1.msra.mxu0 %v87
    %127 = vmatprep.subr.mxu0 0.0
    %128 = vmatpush1.msra.mxu0 0.0
    %129 = vmatprep.subr.mxu0 0.0
    %130 = vmatpush1.msra.mxu0 0.0
    %131 = vmatprep.subr.mxu0 0.0
    %132 = vmatpush1.msra.mxu0 0.0
    %133 = vmatprep.subr.mxu0 0.0
    %134 = vmatpush1.msra.mxu0 0.0
    %135 = vmatprep.subr.mxu0 0.0
    %136 = vmatpush1.msra.mxu0 0.0
    %137 = vmatprep.subr.mxu0 0.0
    %138 = vmatpush1.msra.mxu0 0.0
    %139 = vmatprep.subr.mxu0 0.0
    %140 = vmatpush1.msra.mxu0 0.0
    %141 = vmatprep.subr.mxu0 0.0
    %142 = vmatpush1.msra.mxu0 0.0
    %143 = vmatprep.subr.mxu0 0.0
    %144 = vmatpush1.msra.mxu0 0.0
    %145 = vmatprep.subr.mxu0 0.0
    %146 = vmatpush1.msra.mxu0 0.0
    %147 = vmatprep.subr.mxu0 0.0
    %148 = vmatpush1.msra.mxu0 0.0
    %149 = vmatprep.subr.mxu0 0.0
    %150 = vmatpush1.msra.mxu0 0.0
    %151 = vmatprep.subr.mxu0 0.0
    %152 = vmatpush1.msra.mxu0 0.0
    %153 = vmatprep.subr.mxu0 0.0
    %154 = vmatpush1.msra.mxu0 0.0
    %155 = vmatprep.subr.mxu0 0.0
    %156 = vmatpush1.msra.mxu0 0.0
    %157 = vmatprep.subr.mxu0 0.0
    %158 = vmatpush1.msra.mxu0 0.0
    %159 = vmatprep.mubr.f32.mxu0 0.0
    %160 = vmatmul.mubr.f32.gmra.mrb[0].mxu0 %v71
    %v161 = vpop.f32.mrb[0].mxu0
    %v162 = vadd.f32 %v93, %v161
    %v163 = vpop.f32.mrb[0].mxu0
    %164 = vdwg.mxu0
    %v165 = vtanh.pop %v162
    %v166 = vld [vmem:[#allocation5] sm:$0xff]
    %v167 = vld [vmem:[#allocation5 + $0x8] sm:$0xff]
    %v168 = vld [vmem:[#allocation5 + $0x10] sm:$0xff]
    %v169 = vld [vmem:[#allocation5 + $0x18] sm:$0xff]
    %v170 = vld [vmem:[#allocation5 + $0x20] sm:$0xff]
    %v171 = vld [vmem:[#allocation5 + $0x28] sm:$0xff]
    %v172 = vld [vmem:[#allocation5 + $0x30] sm:$0xff]
    %v173 = vld [vmem:[#allocation5 + $0x38] sm:$0xff]
    %v174 = vld [vmem:[#allocation5 + $0x40] sm:$0xff]
    %v175 = vld [vmem:[#allocation5 + $0x48] sm:$0xff]
    %v176 = vld [vmem:[#allocation5 + $0x50] sm:$0xff]
    %v177 = vld [vmem:[#allocation5 + $0x58] sm:$0xff]
    %v178 = vld [vmem:[#allocation5 + $0x60] sm:$0xff]
    %v179 = vld [vmem:[#allocation5 + $0x68] sm:$0xff]
    %v180 = vld [vmem:[#allocation5 + $0x70] sm:$0xff]
    %v181 = vld [vmem:[#allocation5 + $0x78] sm:$0xff]
    %v182 = vld [vmem:[%s4] sm:$0x1]
    %v184 = vlaneseq
    %v185 = vshrl.u32 %v184, 7
    %v186 = vsub.s32 0, %v185
    %v187 = vrot.slane %v182, %v186
    %189 = vmatprep.subr.mxu0 0.0
    %190 = vmatpush1.msra.mxu0 %v166
    %191 = vmatprep.subr.mxu0 0.0
    %192 = vmatpush1.msra.mxu0 %v167
    %193 = vmatprep.subr.mxu0 0.0
    %194 = vmatpush1.msra.mxu0 %v168
    %195 = vmatprep.subr.mxu0 0.0
    %196 = vmatpush1.msra.mxu0 %v169
    %197 = vmatprep.subr.mxu0 0.0
    %198 = vmatpush1.msra.mxu0 %v170
    %199 = vmatprep.subr.mxu0 0.0
    %200 = vmatpush1.msra.mxu0 %v171
    %201 = vmatprep.subr.mxu0 0.0
    %202 = vmatpush1.msra.mxu0 %v172
    %203 = vmatprep.subr.mxu0 0.0
    %204 = vmatpush1.msra.mxu0 %v173
    %205 = vmatprep.subr.mxu0 0.0
    %206 = vmatpush1.msra.mxu0 %v174
    %207 = vmatprep.subr.mxu0 0.0
    %208 = vmatpush1.msra.mxu0 %v175
    %209 = vmatprep.subr.mxu0 0.0
    %210 = vmatpush1.msra.mxu0 %v176
    %211 = vmatprep.subr.mxu0 0.0
    %212 = vmatpush1.msra.mxu0 %v177
    %213 = vmatprep.subr.mxu0 0.0
    %214 = vmatpush1.msra.mxu0 %v178
    %215 = vmatprep.subr.mxu0 0.0
    %216 = vmatpush1.msra.mxu0 %v179
    %217 = vmatprep.subr.mxu0 0.0
    %218 = vmatpush1.msra.mxu0 %v180
    %219 = vmatprep.subr.mxu0 0.0
    %220 = vmatpush1.msra.mxu0 %v181
    %221 = vmatprep.subr.mxu0 0.0
    %222 = vmatpush1.msra.mxu0 0.0
    %223 = vmatprep.subr.mxu0 0.0
    %224 = vmatpush1.msra.mxu0 0.0
    %225 = vmatprep.subr.mxu0 0.0
    %226 = vmatpush1.msra.mxu0 0.0
    %227 = vmatprep.subr.mxu0 0.0
    %228 = vmatpush1.msra.mxu0 0.0
    %229 = vmatprep.subr.mxu0 0.0
    %230 = vmatpush1.msra.mxu0 0.0
    %231 = vmatprep.subr.mxu0 0.0
    %232 = vmatpush1.msra.mxu0 0.0
    %233 = vmatprep.subr.mxu0 0.0
    %234 = vmatpush1.msra.mxu0 0.0
    %235 = vmatprep.subr.mxu0 0.0
    %236 = vmatpush1.msra.mxu0 0.0
    %237 = vmatprep.subr.mxu0 0.0
    %238 = vmatpush1.msra.mxu0 0.0
    %239 = vmatprep.subr.mxu0 0.0
    %240 = vmatpush1.msra.mxu0 0.0
    %241 = vmatprep.subr.mxu0 0.0
    %242 = vmatpush1.msra.mxu0 0.0
    %243 = vmatprep.subr.mxu0 0.0
    %244 = vmatpush1.msra.mxu0 0.0
    %245 = vmatprep.subr.mxu0 0.0
    %246 = vmatpush1.msra.mxu0 0.0
    %247 = vmatprep.subr.mxu0 0.0
    %248 = vmatpush1.msra.mxu0 0.0
    %249 = vmatprep.subr.mxu0 0.0
    %250 = vmatpush1.msra.mxu0 0.0
    %251 = vmatprep.subr.mxu0 0.0
    %252 = vmatpush1.msra.mxu0 0.0
    %253 = vmatprep.mubr.f32.mxu0 0.0
    %254 = vmatmul.mubr.f32.gmra.mrb[0].mxu0 %v165
    %v255 = vpop.f32.mrb[0].mxu0
    %v256 = vadd.f32 %v187, %v255
    %v257 = vpop.f32.mrb[0].mxu0
    %258 = vdwg.mxu0
    %v259 = vtanh.pop %v256
    %v260 = vld [vmem:[#allocation7] sm:$0xff]
    %v261 = vld [vmem:[#allocation7 + $0x8] sm:$0xff]
    %v262 = vld [vmem:[#allocation7 + $0x10] sm:$0xff]
    %v263 = vld [vmem:[#allocation7 + $0x18] sm:$0xff]
    %v264 = vld [vmem:[#allocation7 + $0x20] sm:$0xff]
    %v265 = vld [vmem:[#allocation7 + $0x28] sm:$0xff]
    %v266 = vld [vmem:[#allocation7 + $0x30] sm:$0xff]
    %v267 = vld [vmem:[#allocation7 + $0x38] sm:$0xff]
    %v268 = vld [vmem:[#allocation7 + $0x40] sm:$0xff]
    %v269 = vld [vmem:[#allocation7 + $0x48] sm:$0xff]
    %v270 = vld [vmem:[#allocation7 + $0x50] sm:$0xff]
    %v271 = vld [vmem:[#allocation7 + $0x58] sm:$0xff]
    %v272 = vld [vmem:[#allocation7 + $0x60] sm:$0xff]
    %v273 = vld [vmem:[#allocation7 + $0x68] sm:$0xff]
    %v274 = vld [vmem:[#allocation7 + $0x70] sm:$0xff]
    %v275 = vld [vmem:[#allocation7 + $0x78] sm:$0xff]
    %v276 = vld [vmem:[%s6] sm:$0x1]
    %v278 = vlaneseq
    %v279 = vshrl.u32 %v278, 7
    %v280 = vsub.s32 0, %v279
    %v281 = vrot.slane %v276, %v280
    %283 = vmatprep.subr.mxu0 0.0
    %284 = vmatpush1.msra.mxu0 %v260
    %285 = vmatprep.subr.mxu0 0.0
    %286 = vmatpush1.msra.mxu0 %v261
    %287 = vmatprep.subr.mxu0 0.0
    %288 = vmatpush1.msra.mxu0 %v262
    %289 = vmatprep.subr.mxu0 0.0
    %290 = vmatpush1.msra.mxu0 %v263
    %291 = vmatprep.subr.mxu0 0.0
    %292 = vmatpush1.msra.mxu0 %v264
    %293 = vmatprep.subr.mxu0 0.0
    %294 = vmatpush1.msra.mxu0 %v265
    %295 = vmatprep.subr.mxu0 0.0
    %296 = vmatpush1.msra.mxu0 %v266
    %297 = vmatprep.subr.mxu0 0.0
    %298 = vmatpush1.msra.mxu0 %v267
    %299 = vmatprep.subr.mxu0 0.0
    %300 = vmatpush1.msra.mxu0 %v268
    %301 = vmatprep.subr.mxu0 0.0
    %302 = vmatpush1.msra.mxu0 %v269
    %303 = vmatprep.subr.mxu0 0.0
    %304 = vmatpush1.msra.mxu0 %v270
    %305 = vmatprep.subr.mxu0 0.0
    %306 = vmatpush1.msra.mxu0 %v271
    %307 = vmatprep.subr.mxu0 0.0
    %308 = vmatpush1.msra.mxu0 %v272
    %309 = vmatprep.subr.mxu0 0.0
    %310 = vmatpush1.msra.mxu0 %v273
    %311 = vmatprep.subr.mxu0 0.0
    %312 = vmatpush1.msra.mxu0 %v274
    %313 = vmatprep.subr.mxu0 0.0
    %314 = vmatpush1.msra.mxu0 %v275
    %315 = vmatprep.subr.mxu0 0.0
    %316 = vmatpush1.msra.mxu0 0.0
    %317 = vmatprep.subr.mxu0 0.0
    %318 = vmatpush1.msra.mxu0 0.0
    %319 = vmatprep.subr.mxu0 0.0
    %320 = vmatpush1.msra.mxu0 0.0
    %321 = vmatprep.subr.mxu0 0.0
    %322 = vmatpush1.msra.mxu0 0.0
    %323 = vmatprep.subr.mxu0 0.0
    %324 = vmatpush1.msra.mxu0 0.0
    %325 = vmatprep.subr.mxu0 0.0
    %326 = vmatpush1.msra.mxu0 0.0
    %327 = vmatprep.subr.mxu0 0.0
    %328 = vmatpush1.msra.mxu0 0.0
    %329 = vmatprep.subr.mxu0 0.0
    %330 = vmatpush1.msra.mxu0 0.0
    %331 = vmatprep.subr.mxu0 0.0
    %332 = vmatpush1.msra.mxu0 0.0
    %333 = vmatprep.subr.mxu0 0.0
    %334 = vmatpush1.msra.mxu0 0.0
    %335 = vmatprep.subr.mxu0 0.0
    %336 = vmatpush1.msra.mxu0 0.0
    %337 = vmatprep.subr.mxu0 0.0
    %338 = vmatpush1.msra.mxu0 0.0
    %339 = vmatprep.subr.mxu0 0.0
    %340 = vmatpush1.msra.mxu0 0.0
    %341 = vmatprep.subr.mxu0 0.0
    %342 = vmatpush1.msra.mxu0 0.0
    %343 = vmatprep.subr.mxu0 0.0
    %344 = vmatpush1.msra.mxu0 0.0
    %345 = vmatprep.subr.mxu0 0.0
    %346 = vmatpush1.msra.mxu0 0.0
    %347 = vmatprep.mubr.f32.mxu0 0.0
    %348 = vmatmul.mubr.f32.gmra.mrb[0].mxu0 %v259
    %v349 = vpop.f32.mrb[0].mxu0
    %v350 = vadd.f32 %v281, %v349
    %v351 = vpop.f32.mrb[0].mxu0
    %352 = vdwg.mxu0
    %vm353 = vcmask 7168
    %354 = vst.msk [vmem:[%s7] sm:$0xff] %vm353, %v350
    // Predicated region
    $region42: #{forward.1} parent=1 // pred_check
      _
    $region43: #{forward.1} parent=1 // pred_check_branch
      %356 = sbr.rel (0) target = $region45
    $region44: #{forward.1} parent=1 // pred_region
      _
    $region45: #{forward.1} parent=1 // pred_fallthru
      _
    // Predicated region
    $region46: #{forward.1} parent=1 // pred_check
      _
    $region47: #{forward.1} parent=1 // pred_check_branch
      %358 = sbr.rel (0) target = $region49
    $region48: #{forward.1} parent=1 // pred_region
      _
    $region49: #{forward.1} parent=1 // pred_fallthru
      _
    %359 = vsyncpa [#allocation4], 1
    %360 = vsyncpa [#allocation6], 1

</llo_original>
